<compile_context>
chip_gen: v5e
topology: v5e:2x2
jax: 0.10.0
libtpu: 0.0.40
codegen_flags: <defaults>
</compile_context>

<pallas_src>
import jax
import jax.numpy as jnp
from jax import lax
from jax.experimental import pallas as pl
from jax.experimental.pallas import tpu as pltpu


def _avgpool_kernel(ids_ref, emb_ref, out_ref):
    """One batch tile: out = (one-hot counts of ids) @ table * (1/S).

    ids_ref : VMEM [TB, S]     int32 token ids for this batch tile
    emb_ref : VMEM [V_pad, D]  embedding table (grid-constant, VMEM-resident)
    out_ref : VMEM [TB, D]     float32 mean-pooled embeddings
    """
    tb, seq = ids_ref.shape
    v_pad, _ = emb_ref.shape
    inv_s = jnp.float32(1.0 / seq)

    ids = ids_ref[...]                                          # (TB, S) int32
    vocab = lax.broadcasted_iota(jnp.int32, (tb, v_pad), 1)     # (TB, V_pad)

    # Build counts[TB, V_pad]: one full-vreg VALU compare + add per token
    # column. S is static and small, so a Python-unrolled loop is fine; for
    # very long sequences this should be chunked over S instead.
    counts = jnp.zeros((tb, v_pad), jnp.float32)
    for s in range(seq):
        counts = counts + (ids[:, s:s + 1] == vocab).astype(jnp.float32)

    # A single MXU matmul performs the gather + sum over the sequence for the
    # whole (TB, D) tile; one unmasked full-tile store writes the result.
    pooled = jnp.dot(
        counts.astype(emb_ref.dtype),      # exact: counts are integers <= S
        emb_ref[...],
        precision=lax.Precision.HIGHEST,   # keep f32 accuracy on the MXU
        preferred_element_type=jnp.float32,
    )
    out_ref[...] = (pooled * inv_s).astype(out_ref.dtype)


def avgpool(ids, emb_table, *, tb=None):
    """ids: [B, S] integer token indices; emb_table: [V, D] float.

    Returns [B, D] float32 = emb_table[ids].mean(axis=1), matching
    `E(instances).mean(axis=1).float()`.
    """
    B, S = ids.shape
    V, D = emb_table.shape

    # --- batch tile size -------------------------------------------------
    if tb is None:
        tb = 256                      # good MXU M tile on v6e/v7x (fine on v5e)
    tb = max(8, (min(tb, ((B + 7) // 8) * 8) // 8) * 8)
    if B > 8 and (B + tb - 1) // tb == 1:
        # v7x has two TensorCores; give the "parallel" batch axis >= 2 steps.
        tb = max(8, (((B + 1) // 2 + 7) // 8) * 8)
    b_pad = ((B + tb - 1) // tb) * tb

    # --- vocab padding (MXU K dimension, lane-aligned) --------------------
    # Padded rows are zero and never matched by the one-hot counts.
    v_pad = ((V + 127) // 128) * 128

    ids_p = ids.astype(jnp.int32)
    if b_pad != B:
        ids_p = jnp.pad(ids_p, ((0, b_pad - B), (0, 0)))
    emb_p = emb_table
    if v_pad != V:
        emb_p = jnp.pad(emb_p, ((0, v_pad - V), (0, 0)))

    # --- generation-aware VMEM budgeting ----------------------------------
    itemsize = jnp.dtype(emb_p.dtype).itemsize

    def vmem_needed(table_buffers):
        table_bytes = v_pad * D * itemsize
        ids_tile = tb * S * 4
        out_tile = tb * D * 4
        work = 4 * tb * v_pad * 4          # counts + compare temporaries (rough)
        headroom = 2 * 1024 * 1024
        return (table_buffers * table_bytes + 2 * ids_tile + 2 * out_tile
                + work + headroom)

    try:
        physical_vmem = int(pltpu.get_tpu_info().vmem_capacity_bytes)
    except Exception:
        physical_vmem = 64 * 1024 * 1024   # v7x has the smallest per-TC VMEM
    budget = int(physical_vmem * 0.9)

    if vmem_needed(1) > budget:
        # TODO(synk): large-vocab path (HBM-resident table, memory_space=pl.ANY,
        # per-tile double-buffered DMA gather) not implemented here.
        raise NotImplementedError(
            "embedding table too large for the VMEM-resident fast path")

    # --- build + run -------------------------------------------------------
    def run(table_buffers):
        table_kwargs = {}
        if table_buffers == 1:
            # Grid-constant table: a single VMEM buffer is enough.
            table_kwargs["pipeline_mode"] = pl.Buffered(1)
        vmem_limit = int(min(budget, max(vmem_needed(table_buffers),
                                         16 * 1024 * 1024)))
        call = pl.pallas_call(
            _avgpool_kernel,
            out_shape=jax.ShapeDtypeStruct((b_pad, D), jnp.float32),
            grid=(b_pad // tb,),
            in_specs=[
                pl.BlockSpec((tb, S), lambda i: (i, 0)),            # ids tile
                pl.BlockSpec((v_pad, D), lambda i: (0, 0),          # table
                             **table_kwargs),
            ],
            out_specs=pl.BlockSpec((tb, D), lambda i: (i, 0)),
            compiler_params=pltpu.CompilerParams(
                dimension_semantics=("parallel",),
                vmem_limit_bytes=vmem_limit,
            ),
        )
        return call(ids_p, emb_p)

    try:
        out = run(1)            # preferred: single-buffered resident table
    except Exception:           # fallback if Buffered(1) is unsupported
        out = run(2)

    return out[:B]


if __name__ == "__main__":
    key = jax.random.PRNGKey(0)
    k_emb, k_ids = jax.random.split(key)

    VOCAB = 50
    EMBED = 128   # embedding dim (lane-dense)
    B, S = 2, 8   # batch, sequence length (bag size)

    # Deterministic synthetic embedding table (stands in for nn.Embedding weights).
    emb_table = jax.random.normal(k_emb, (VOCAB, EMBED), dtype=jnp.float32)
    ids = jax.random.randint(k_ids, (B, S), 0, VOCAB, dtype=jnp.int32)

    out = avgpool(ids, emb_table)
    out = jax.block_until_ready(out)

    # Reference: representations = E(instances); representations.mean(axis=1).float()
    ref = jnp.take(emb_table, ids, axis=0).mean(axis=1).astype(jnp.float32)

    assert out.shape == (B, EMBED)
    assert out.dtype == jnp.float32
    assert jnp.allclose(out, ref, atol=1e-5, rtol=1e-5)

    # Second check: non-multiple batch exercises padding and a 2-step grid.
    k2a, k2b = jax.random.split(jax.random.PRNGKey(1))
    B2, S2 = 37, 12
    emb2 = jax.random.normal(k2a, (VOCAB, EMBED), dtype=jnp.float32)
    ids2 = jax.random.randint(k2b, (B2, S2), 0, VOCAB, dtype=jnp.int32)
    out2 = jax.block_until_ready(avgpool(ids2, emb2))
    ref2 = jnp.take(emb2, ids2, axis=0).mean(axis=1).astype(jnp.float32)
    assert out2.shape == (B2, EMBED)
    assert jnp.allclose(out2, ref2, atol=1e-5, rtol=1e-5)

    print("KERNEL_OK")
</pallas_src>

<mosaic_0001>
module attributes {stable_mosaic.version = 11 : i64} {
  func.func @_avgpool_kernel(%arg0: i32, %arg1: memref<8x8xi32, #tpu.memory_space<vmem>>, %arg2: memref<128x128xf32, #tpu.memory_space<vmem>>, %arg3: memref<8x128xf32, #tpu.memory_space<vmem>>) attributes {dimension_semantics = [#tpu.dimension_semantics<parallel>], iteration_bounds = array<i64: 1>, scalar_prefetch = 0 : i64, scratch_operands = 0 : i64, tpu.core_type = #tpu.core_type<tc>, window_params = [{transform_indices = @transform_0, window_bounds = array<i64: 8, 8>}, {pipeline_mode = #tpu.pipeline_mode<synchronous>, transform_indices = @transform_1, window_bounds = array<i64: 128, 128>}, {transform_indices = @transform_2, window_bounds = array<i64: 8, 128>}]} {
    %c0 = arith.constant 0 : index
    %c0_0 = arith.constant 0 : index
    %0 = vector.load %arg1[%c0, %c0_0] : memref<8x8xi32, #tpu.memory_space<vmem>>, vector<8x8xi32>
    %1 = tpu.iota {dimensions = array<i32: 1>} : vector<8x128xi32>
    %cst = arith.constant 0.000000e+00 : f32
    %2 = vector.broadcast %cst : f32 to vector<8x128xf32>
    %3 = vector.extract_strided_slice %0 {offsets = [0, 0], sizes = [8, 1], strides = [1, 1]} : vector<8x8xi32> to vector<8x1xi32>
    %4 = vector.broadcast %3 : vector<8x1xi32> to vector<8x128xi32>
    %5 = arith.cmpi eq, %4, %1 : vector<8x128xi32>
    %6 = arith.extui %5 : vector<8x128xi1> to vector<8x128xi32>
    %7 = arith.sitofp %6 : vector<8x128xi32> to vector<8x128xf32>
    %8 = arith.addf %2, %7 : vector<8x128xf32>
    %9 = vector.extract_strided_slice %0 {offsets = [0, 1], sizes = [8, 1], strides = [1, 1]} : vector<8x8xi32> to vector<8x1xi32>
    %10 = vector.broadcast %9 : vector<8x1xi32> to vector<8x128xi32>
    %11 = arith.cmpi eq, %10, %1 : vector<8x128xi32>
    %12 = arith.extui %11 : vector<8x128xi1> to vector<8x128xi32>
    %13 = arith.sitofp %12 : vector<8x128xi32> to vector<8x128xf32>
    %14 = arith.addf %8, %13 : vector<8x128xf32>
    %15 = vector.extract_strided_slice %0 {offsets = [0, 2], sizes = [8, 1], strides = [1, 1]} : vector<8x8xi32> to vector<8x1xi32>
    %16 = vector.broadcast %15 : vector<8x1xi32> to vector<8x128xi32>
    %17 = arith.cmpi eq, %16, %1 : vector<8x128xi32>
    %18 = arith.extui %17 : vector<8x128xi1> to vector<8x128xi32>
    %19 = arith.sitofp %18 : vector<8x128xi32> to vector<8x128xf32>
    %20 = arith.addf %14, %19 : vector<8x128xf32>
    %21 = vector.extract_strided_slice %0 {offsets = [0, 3], sizes = [8, 1], strides = [1, 1]} : vector<8x8xi32> to vector<8x1xi32>
    %22 = vector.broadcast %21 : vector<8x1xi32> to vector<8x128xi32>
    %23 = arith.cmpi eq, %22, %1 : vector<8x128xi32>
    %24 = arith.extui %23 : vector<8x128xi1> to vector<8x128xi32>
    %25 = arith.sitofp %24 : vector<8x128xi32> to vector<8x128xf32>
    %26 = arith.addf %20, %25 : vector<8x128xf32>
    %27 = vector.extract_strided_slice %0 {offsets = [0, 4], sizes = [8, 1], strides = [1, 1]} : vector<8x8xi32> to vector<8x1xi32>
    %28 = vector.broadcast %27 : vector<8x1xi32> to vector<8x128xi32>
    %29 = arith.cmpi eq, %28, %1 : vector<8x128xi32>
    %30 = arith.extui %29 : vector<8x128xi1> to vector<8x128xi32>
    %31 = arith.sitofp %30 : vector<8x128xi32> to vector<8x128xf32>
    %32 = arith.addf %26, %31 : vector<8x128xf32>
    %33 = vector.extract_strided_slice %0 {offsets = [0, 5], sizes = [8, 1], strides = [1, 1]} : vector<8x8xi32> to vector<8x1xi32>
    %34 = vector.broadcast %33 : vector<8x1xi32> to vector<8x128xi32>
    %35 = arith.cmpi eq, %34, %1 : vector<8x128xi32>
    %36 = arith.extui %35 : vector<8x128xi1> to vector<8x128xi32>
    %37 = arith.sitofp %36 : vector<8x128xi32> to vector<8x128xf32>
    %38 = arith.addf %32, %37 : vector<8x128xf32>
    %39 = vector.extract_strided_slice %0 {offsets = [0, 6], sizes = [8, 1], strides = [1, 1]} : vector<8x8xi32> to vector<8x1xi32>
    %40 = vector.broadcast %39 : vector<8x1xi32> to vector<8x128xi32>
    %41 = arith.cmpi eq, %40, %1 : vector<8x128xi32>
    %42 = arith.extui %41 : vector<8x128xi1> to vector<8x128xi32>
    %43 = arith.sitofp %42 : vector<8x128xi32> to vector<8x128xf32>
    %44 = arith.addf %38, %43 : vector<8x128xf32>
    %45 = vector.extract_strided_slice %0 {offsets = [0, 7], sizes = [8, 1], strides = [1, 1]} : vector<8x8xi32> to vector<8x1xi32>
    %46 = vector.broadcast %45 : vector<8x1xi32> to vector<8x128xi32>
    %47 = arith.cmpi eq, %46, %1 : vector<8x128xi32>
    %48 = arith.extui %47 : vector<8x128xi1> to vector<8x128xi32>
    %49 = arith.sitofp %48 : vector<8x128xi32> to vector<8x128xf32>
    %50 = arith.addf %44, %49 : vector<8x128xf32>
    %c0_1 = arith.constant 0 : index
    %c0_2 = arith.constant 0 : index
    %51 = vector.load %arg2[%c0_1, %c0_2] : memref<128x128xf32, #tpu.memory_space<vmem>>, vector<128x128xf32>
    %cst_3 = arith.constant dense<0.000000e+00> : vector<8x128xf32>
    %52 = tpu.matmul %50, %51, %cst_3 {dimension_numbers = #tpu.dot_dimension_numbers<[1], [0], [0], [1], [0, 0, 1, 1], [], []>, precision = #tpu.contract_precision<fp32>} : vector<8x128xf32>, vector<128x128xf32>, vector<8x128xf32> -> vector<8x128xf32>
    %cst_4 = arith.constant 1.250000e-01 : f32
    %53 = vector.broadcast %cst_4 : f32 to vector<8x128xf32>
    %54 = arith.mulf %52, %53 : vector<8x128xf32>
    %c0_5 = arith.constant 0 : index
    %c0_6 = arith.constant 0 : index
    %55 = vector.load %arg3[%c0_5, %c0_6] : memref<8x128xf32, #tpu.memory_space<vmem>>, vector<8x128xf32>
    tpu.vector_store %arg3[%c0_5, %c0_6], %54 {strides = array<i32>} : memref<8x128xf32, #tpu.memory_space<vmem>>, vector<8x128xf32>,
    return
  }
  func.func @transform_0(%arg0: i32) -> (i32, i32) {
    %c0_i32 = arith.constant 0 : i32
    %c0_i32_0 = arith.constant 0 : i32
    return %arg0, %c0_i32 : i32, i32
  }
  func.func @transform_1(%arg0: i32) -> (i32, i32) {
    %c0_i32 = arith.constant 0 : i32
    %c0_i32_0 = arith.constant 0 : i32
    %c0_i32_1 = arith.constant 0 : i32
    return %c0_i32, %c0_i32_0 : i32, i32
  }
  func.func @transform_2(%arg0: i32) -> (i32, i32) {
    %c0_i32 = arith.constant 0 : i32
    %c0_i32_0 = arith.constant 0 : i32
    return %arg0, %c0_i32 : i32, i32
  }
}

module attributes {stable_mosaic.version = 11 : i64} {
  func.func @_avgpool_kernel(%arg0: i32, %arg1: memref<8x8xi32, #tpu.memory_space<vmem>>, %arg2: memref<128x128xf32, #tpu.memory_space<vmem>>, %arg3: memref<8x128xf32, #tpu.memory_space<vmem>>) attributes {dimension_semantics = [#tpu.dimension_semantics<parallel>], iteration_bounds = array<i64: 1>, scalar_prefetch = 0 : i64, scratch_operands = 0 : i64, tpu.core_type = #tpu.core_type<tc>, window_params = [{transform_indices = @transform_0, window_bounds = array<i64: 8, 8>}, {pipeline_mode = #tpu.pipeline_mode<synchronous>, transform_indices = @transform_1, window_bounds = array<i64: 128, 128>}, {transform_indices = @transform_2, window_bounds = array<i64: 8, 128>}]} {
    %c0 = arith.constant 0 : index
    %c0_0 = arith.constant 0 : index
    %0 = vector.load %arg1[%c0, %c0_0] : memref<8x8xi32, #tpu.memory_space<vmem>>, vector<8x8xi32>
    %1 = tpu.iota {dimensions = array<i32: 1>} : vector<8x128xi32>
    %cst = arith.constant 0.000000e+00 : f32
    %2 = vector.broadcast %cst : f32 to vector<8x128xf32>
    %3 = vector.extract_strided_slice %0 {offsets = [0, 0], sizes = [8, 1], strides = [1, 1]} : vector<8x8xi32> to vector<8x1xi32>
    %4 = vector.broadcast %3 : vector<8x1xi32> to vector<8x128xi32>
    %5 = arith.cmpi eq, %4, %1 : vector<8x128xi32>
    %6 = arith.extui %5 : vector<8x128xi1> to vector<8x128xi32>
    %7 = arith.sitofp %6 : vector<8x128xi32> to vector<8x128xf32>
    %8 = arith.addf %2, %7 : vector<8x128xf32>
    %9 = vector.extract_strided_slice %0 {offsets = [0, 1], sizes = [8, 1], strides = [1, 1]} : vector<8x8xi32> to vector<8x1xi32>
    %10 = vector.broadcast %9 : vector<8x1xi32> to vector<8x128xi32>
    %11 = arith.cmpi eq, %10, %1 : vector<8x128xi32>
    %12 = arith.extui %11 : vector<8x128xi1> to vector<8x128xi32>
    %13 = arith.sitofp %12 : vector<8x128xi32> to vector<8x128xf32>
    %14 = arith.addf %8, %13 : vector<8x128xf32>
    %15 = vector.extract_strided_slice %0 {offsets = [0, 2], sizes = [8, 1], strides = [1, 1]} : vector<8x8xi32> to vector<8x1xi32>
    %16 = vector.broadcast %15 : vector<8x1xi32> to vector<8x128xi32>
    %17 = arith.cmpi eq, %16, %1 : vector<8x128xi32>
    %18 = arith.extui %17 : vector<8x128xi1> to vector<8x128xi32>
    %19 = arith.sitofp %18 : vector<8x128xi32> to vector<8x128xf32>
    %20 = arith.addf %14, %19 : vector<8x128xf32>
    %21 = vector.extract_strided_slice %0 {offsets = [0, 3], sizes = [8, 1], strides = [1, 1]} : vector<8x8xi32> to vector<8x1xi32>
    %22 = vector.broadcast %21 : vector<8x1xi32> to vector<8x128xi32>
    %23 = arith.cmpi eq, %22, %1 : vector<8x128xi32>
    %24 = arith.extui %23 : vector<8x128xi1> to vector<8x128xi32>
    %25 = arith.sitofp %24 : vector<8x128xi32> to vector<8x128xf32>
    %26 = arith.addf %20, %25 : vector<8x128xf32>
    %27 = vector.extract_strided_slice %0 {offsets = [0, 4], sizes = [8, 1], strides = [1, 1]} : vector<8x8xi32> to vector<8x1xi32>
    %28 = vector.broadcast %27 : vector<8x1xi32> to vector<8x128xi32>
    %29 = arith.cmpi eq, %28, %1 : vector<8x128xi32>
    %30 = arith.extui %29 : vector<8x128xi1> to vector<8x128xi32>
    %31 = arith.sitofp %30 : vector<8x128xi32> to vector<8x128xf32>
    %32 = arith.addf %26, %31 : vector<8x128xf32>
    %33 = vector.extract_strided_slice %0 {offsets = [0, 5], sizes = [8, 1], strides = [1, 1]} : vector<8x8xi32> to vector<8x1xi32>
    %34 = vector.broadcast %33 : vector<8x1xi32> to vector<8x128xi32>
    %35 = arith.cmpi eq, %34, %1 : vector<8x128xi32>
    %36 = arith.extui %35 : vector<8x128xi1> to vector<8x128xi32>
    %37 = arith.sitofp %36 : vector<8x128xi32> to vector<8x128xf32>
    %38 = arith.addf %32, %37 : vector<8x128xf32>
    %39 = vector.extract_strided_slice %0 {offsets = [0, 6], sizes = [8, 1], strides = [1, 1]} : vector<8x8xi32> to vector<8x1xi32>
    %40 = vector.broadcast %39 : vector<8x1xi32> to vector<8x128xi32>
    %41 = arith.cmpi eq, %40, %1 : vector<8x128xi32>
    %42 = arith.extui %41 : vector<8x128xi1> to vector<8x128xi32>
    %43 = arith.sitofp %42 : vector<8x128xi32> to vector<8x128xf32>
    %44 = arith.addf %38, %43 : vector<8x128xf32>
    %45 = vector.extract_strided_slice %0 {offsets = [0, 7], sizes = [8, 1], strides = [1, 1]} : vector<8x8xi32> to vector<8x1xi32>
    %46 = vector.broadcast %45 : vector<8x1xi32> to vector<8x128xi32>
    %47 = arith.cmpi eq, %46, %1 : vector<8x128xi32>
    %48 = arith.extui %47 : vector<8x128xi1> to vector<8x128xi32>
    %49 = arith.sitofp %48 : vector<8x128xi32> to vector<8x128xf32>
    %50 = arith.addf %44, %49 : vector<8x128xf32>
    %c0_1 = arith.constant 0 : index
    %c0_2 = arith.constant 0 : index
    %51 = vector.load %arg2[%c0_1, %c0_2] : memref<128x128xf32, #tpu.memory_space<vmem>>, vector<128x128xf32>
    %cst_3 = arith.constant dense<0.000000e+00> : vector<8x128xf32>
    %52 = tpu.matmul %50, %51, %cst_3 {dimension_numbers = #tpu.dot_dimension_numbers<[1], [0], [0], [1], [0, 0, 1, 1], [], []>, precision = #tpu.contract_precision<fp32>} : vector<8x128xf32>, vector<128x128xf32>, vector<8x128xf32> -> vector<8x128xf32>
    %cst_4 = arith.constant 1.250000e-01 : f32
    %53 = vector.broadcast %cst_4 : f32 to vector<8x128xf32>
    %54 = arith.mulf %52, %53 : vector<8x128xf32>
    %c0_5 = arith.constant 0 : index
    %c0_6 = arith.constant 0 : index
    %55 = vector.load %arg3[%c0_5, %c0_6] : memref<8x128xf32, #tpu.memory_space<vmem>>, vector<8x128xf32>
    tpu.vector_store %arg3[%c0_5, %c0_6], %54 {strides = array<i32>} : memref<8x128xf32, #tpu.memory_space<vmem>>, vector<8x128xf32>,
    return
  }
  func.func @transform_0(%arg0: i32) -> (i32, i32) {
    %c0_i32 = arith.constant 0 : i32
    %c0_i32_0 = arith.constant 0 : i32
    return %arg0, %c0_i32 : i32, i32
  }
  func.func @transform_1(%arg0: i32) -> (i32, i32) {
    %c0_i32 = arith.constant 0 : i32
    %c0_i32_0 = arith.constant 0 : i32
    %c0_i32_1 = arith.constant 0 : i32
    return %c0_i32, %c0_i32_0 : i32, i32
  }
  func.func @transform_2(%arg0: i32) -> (i32, i32) {
    %c0_i32 = arith.constant 0 : i32
    %c0_i32_0 = arith.constant 0 : i32
    return %arg0, %c0_i32 : i32, i32
  }
}

</mosaic_0001>

<llo_original>
// kernel: tpu_custom_call.1
$region0: #{tpu_custom_call.1}
  #allocation0 [shape = 'u32[]', space=smem, size = 0x4, offset = 0x4, fixed_abs, tag = 'smem constant byte address 0x4 - core index']
  #allocation1 [shape = 'u32[72,128]{1,0:T(1,128)}', space=vmem, size = 0x9000, scoped, tag = 'internal scratch']
  %s0 = inlined_call_operand.hbm [shape: s32[8,8], index: 0, kind: input, shape index: {}]
  %s1 = inlined_call_operand.hbm [shape: f32[128,128], index: 1, kind: input, shape index: {}]
  %s2 = inlined_call_operand.hbm [shape: f32[8,128], index: 2, kind: output, shape index: {}]
  %s3 = sld [smem:[#allocation0]]
  $region26: #{tpu_custom_call.1} parent=0
    _
  %s5 = ssub.s32 1, %s3
  %s6 = scalar_select 0, %s5, %s3
  $region1: #{tpu_custom_call.1} parent=0
    #allocation2 [shape = 'u8[4096]{0}', space=vmem, size = 0x1000, scoped, tag = 'input window, operand 0, single buffered']
    #allocation3 [shape = 's32[1]{0}', space=sflag, size = 0x4, scoped, tag = 'scoped memory for tpu_custom_call.1']
    #allocation4 [shape = 's32[1]{0}', space=sflag, size = 0x4, scoped, tag = 'scoped memory for tpu_custom_call.1']
    #allocation5 [shape = 'u8[65536]{0}', space=vmem, size = 0x10000, scoped, tag = 'input window, operand 1, single buffered']
    #allocation6 [shape = 's32[1]{0}', space=sflag, size = 0x4, scoped, tag = 'scoped memory for tpu_custom_call.1']
    #allocation7 [shape = 'u8[4096]{0}', space=vmem, size = 0x1000, scoped, tag = 'output window, operand 0, single buffered']
    %7 = vsyncpa [#allocation3], 0
    %8 = vsyncpa [#allocation6], 0
    %9 = vsyncpa [#allocation4], 0
    // Predicated region
    $region2: #{tpu_custom_call.1} parent=1 // pred_check
      _
    $region3: #{tpu_custom_call.1} parent=1 // pred_check_branch
      %11 = sbr.rel (0) target = $region5
    $region4: #{tpu_custom_call.1} parent=1 // pred_region
      %13 = vsyncadd [#allocation3], 0
      %s15 = sshll.u32 %s0, 4
      %s16 = int_to_ptr.hbm [resolvable:$true] %s15
      %s17 = sshll.u32 [#allocation2], 4
      %s18 = int_to_ptr.vmem [resolvable:$true] %s17
      %20 = dma.hbm_to_vmem [thread:$0]  %s16, 128, %s18, [#allocation3]
    $region5: #{tpu_custom_call.1} parent=1 // pred_fallthru
      _
    // Predicated region
    $region6: #{tpu_custom_call.1} parent=1 // pred_check
      _
    $region7: #{tpu_custom_call.1} parent=1 // pred_check_branch
      %22 = sbr.rel (0) target = $region9
    $region8: #{tpu_custom_call.1} parent=1 // pred_region
      %24 = vsyncadd [#allocation6], 0
      %s25 = sshll.u32 %s1, 4
      %s26 = int_to_ptr.hbm [resolvable:$true] %s25
      %s27 = sshll.u32 [#allocation5], 4
      %s28 = int_to_ptr.vmem [resolvable:$true] %s27
      %33 = dma.hbm_to_vmem [thread:$0]  %s26, 2048, %s28, [#allocation6], 128, 128, 8
    $region9: #{tpu_custom_call.1} parent=1 // pred_fallthru
      _
    // Predicated region
    $region10: #{tpu_custom_call.1} parent=1 // pred_check
      _
    $region11: #{tpu_custom_call.1} parent=1 // pred_check_branch
      %35 = sbr.rel (0) target = $region13
    $region12: #{tpu_custom_call.1} parent=1 // pred_region
      %37 = dma.done [#allocation3], 128
    $region13: #{tpu_custom_call.1} parent=1 // pred_fallthru
      _
    // Predicated region
    $region14: #{tpu_custom_call.1} parent=1 // pred_check
      _
    $region15: #{tpu_custom_call.1} parent=1 // pred_check_branch
      %39 = sbr.rel (0) target = $region17
    $region16: #{tpu_custom_call.1} parent=1 // pred_region
      %41 = dma.done [#allocation6], 2048
    $region17: #{tpu_custom_call.1} parent=1 // pred_fallthru
      _
    %v42 = vld [vmem:[#allocation2] sm:$0xff]
    %v43 = vlaneseq
    %v44 = vand.u32 %v43, 127
    %45 = vset.pattern.permute.xlu0 0
    %46 = vperm.xlu0 %45, %v42
    %v47 = vpop.permute.xlu0 %46
    %vm48 = vcmp.eq.s32.totalorder %v47, %v44
    %v49 = vsel %vm48, 1, 0
    %v50 = vcvt.s32.f32 %v49
    %v51 = vadd.f32 %v50, 0.0
    %52 = vset.pattern.permute.xlu0 1
    %53 = vperm.xlu0 %52, %v42
    %v54 = vpop.permute.xlu0 %53
    %vm55 = vcmp.eq.s32.totalorder %v54, %v44
    %v56 = vsel %vm55, 1, 0
    %v57 = vcvt.s32.f32 %v56
    %v58 = vadd.f32 %v51, %v57
    %59 = vset.pattern.permute.xlu0 2
    %60 = vperm.xlu0 %59, %v42
    %v61 = vpop.permute.xlu0 %60
    %vm62 = vcmp.eq.s32.totalorder %v61, %v44
    %v63 = vsel %vm62, 1, 0
    %v64 = vcvt.s32.f32 %v63
    %v65 = vadd.f32 %v58, %v64
    %66 = vset.pattern.permute.xlu0 3
    %67 = vperm.xlu0 %66, %v42
    %v68 = vpop.permute.xlu0 %67
    %vm69 = vcmp.eq.s32.totalorder %v68, %v44
    %v70 = vsel %vm69, 1, 0
    %v71 = vcvt.s32.f32 %v70
    %v72 = vadd.f32 %v65, %v71
    %73 = vset.pattern.permute.xlu0 4
    %74 = vperm.xlu0 %73, %v42
    %v75 = vpop.permute.xlu0 %74
    %vm76 = vcmp.eq.s32.totalorder %v75, %v44
    %v77 = vsel %vm76, 1, 0
    %v78 = vcvt.s32.f32 %v77
    %v79 = vadd.f32 %v72, %v78
    %80 = vset.pattern.permute.xlu0 5
    %81 = vperm.xlu0 %80, %v42
    %v82 = vpop.permute.xlu0 %81
    %vm83 = vcmp.eq.s32.totalorder %v82, %v44
    %v84 = vsel %vm83, 1, 0
    %v85 = vcvt.s32.f32 %v84
    %v86 = vadd.f32 %v79, %v85
    %87 = vset.pattern.permute.xlu0 6
    %88 = vperm.xlu0 %87, %v42
    %v89 = vpop.permute.xlu0 %88
    %vm90 = vcmp.eq.s32.totalorder %v89, %v44
    %v91 = vsel %vm90, 1, 0
    %v92 = vcvt.s32.f32 %v91
    %v93 = vadd.f32 %v86, %v92
    %94 = vset.pattern.permute.xlu0 7
    %95 = vperm.xlu0 %94, %v42
    %v96 = vpop.permute.xlu0 %95
    %vm97 = vcmp.eq.s32.totalorder %v96, %v44
    %v98 = vsel %vm97, 1, 0
    %v99 = vcvt.s32.f32 %v98
    %v100 = vadd.f32 %v93, %v99
    %v101 = vld [vmem:[#allocation5] sm:$0xff]
    %v102 = vld [vmem:[#allocation5 + $0x8] sm:$0xff]
    %v103 = vld [vmem:[#allocation5 + $0x10] sm:$0xff]
    %v104 = vld [vmem:[#allocation5 + $0x18] sm:$0xff]
    %v105 = vld [vmem:[#allocation5 + $0x20] sm:$0xff]
    %v106 = vld [vmem:[#allocation5 + $0x28] sm:$0xff]
    %v107 = vld [vmem:[#allocation5 + $0x30] sm:$0xff]
    %v108 = vld [vmem:[#allocation5 + $0x38] sm:$0xff]
    %v109 = vld [vmem:[#allocation5 + $0x40] sm:$0xff]
    %v110 = vld [vmem:[#allocation5 + $0x48] sm:$0xff]
    %v111 = vld [vmem:[#allocation5 + $0x50] sm:$0xff]
    %v112 = vld [vmem:[#allocation5 + $0x58] sm:$0xff]
    %v113 = vld [vmem:[#allocation5 + $0x60] sm:$0xff]
    %v114 = vld [vmem:[#allocation5 + $0x68] sm:$0xff]
    %v115 = vld [vmem:[#allocation5 + $0x70] sm:$0xff]
    %v116 = vld [vmem:[#allocation5 + $0x78] sm:$0xff]
    %v117 = vand.u32 %v116, 4294901760
    %118 = vmatpush.msra.mxu0 %v117
    %v119 = vand.u32 %v115, 4294901760
    %120 = vmatpush.msra.mxu0 %v119
    %v121 = vand.u32 %v114, 4294901760
    %122 = vmatpush.msra.mxu0 %v121
    %v123 = vand.u32 %v113, 4294901760
    %124 = vmatpush.msra.mxu0 %v123
    %v125 = vand.u32 %v112, 4294901760
    %126 = vmatpush.msra.mxu0 %v125
    %v127 = vand.u32 %v111, 4294901760
    %128 = vmatpush.msra.mxu0 %v127
    %v129 = vand.u32 %v110, 4294901760
    %130 = vmatpush.msra.mxu0 %v129
    %v131 = vand.u32 %v109, 4294901760
    %132 = vmatpush.msra.mxu0 %v131
    %v133 = vand.u32 %v108, 4294901760
    %134 = vmatpush.msra.mxu0 %v133
    %v135 = vand.u32 %v107, 4294901760
    %136 = vmatpush.msra.mxu0 %v135
    %v137 = vand.u32 %v106, 4294901760
    %138 = vmatpush.msra.mxu0 %v137
    %v139 = vand.u32 %v105, 4294901760
    %140 = vmatpush.msra.mxu0 %v139
    %v141 = vand.u32 %v104, 4294901760
    %142 = vmatpush.msra.mxu0 %v141
    %v143 = vand.u32 %v103, 4294901760
    %144 = vmatpush.msra.mxu0 %v143
    %v145 = vand.u32 %v102, 4294901760
    %146 = vmatpush.msra.mxu0 %v145
    %v147 = vand.u32 %v101, 4294901760
    %148 = vmatpush.msra.mxu0 %v147
    %v149 = vand.u32 %v100, 4294901760
    %v150 = vsub.f32 %v100, %v149
    %v151 = vand.u32 %v150, 4294901760
    %v152 = vsub.f32 %v150, %v151
    %v153 = vand.u32 %v152, 4294901760
    %154 = vmatmul.f32.gmra.mxu0 %v153
    %v155 = vpop.f32.mrf.mxu0
    %v156 = vadd.f32 0.0, %v155
    %157 = vdwg.mxu0
    %v158 = vand.u32 %v116, 4294901760
    %v159 = vsub.f32 %v116, %v158
    %v160 = vand.u32 %v159, 4294901760
    %v161 = vsub.f32 %v159, %v160
    %v162 = vand.u32 %v161, 4294901760
    %163 = vmatpush.msra.mxu0 %v162
    %v164 = vand.u32 %v115, 4294901760
    %v165 = vsub.f32 %v115, %v164
    %v166 = vand.u32 %v165, 4294901760
    %v167 = vsub.f32 %v165, %v166
    %v168 = vand.u32 %v167, 4294901760
    %169 = vmatpush.msra.mxu0 %v168
    %v170 = vand.u32 %v114, 4294901760
    %v171 = vsub.f32 %v114, %v170
    %v172 = vand.u32 %v171, 4294901760
    %v173 = vsub.f32 %v171, %v172
    %v174 = vand.u32 %v173, 4294901760
    %175 = vmatpush.msra.mxu0 %v174
    %v176 = vand.u32 %v113, 4294901760
    %v177 = vsub.f32 %v113, %v176
    %v178 = vand.u32 %v177, 4294901760
    %v179 = vsub.f32 %v177, %v178
    %v180 = vand.u32 %v179, 4294901760
    %181 = vmatpush.msra.mxu0 %v180
    %v182 = vand.u32 %v112, 4294901760
    %v183 = vsub.f32 %v112, %v182
    %v184 = vand.u32 %v183, 4294901760
    %v185 = vsub.f32 %v183, %v184
    %v186 = vand.u32 %v185, 4294901760
    %187 = vmatpush.msra.mxu0 %v186
    %v188 = vand.u32 %v111, 4294901760
    %v189 = vsub.f32 %v111, %v188
    %v190 = vand.u32 %v189, 4294901760
    %v191 = vsub.f32 %v189, %v190
    %v192 = vand.u32 %v191, 4294901760
    %193 = vmatpush.msra.mxu0 %v192
    %v194 = vand.u32 %v110, 4294901760
    %v195 = vsub.f32 %v110, %v194
    %v196 = vand.u32 %v195, 4294901760
    %v197 = vsub.f32 %v195, %v196
    %v198 = vand.u32 %v197, 4294901760
    %199 = vmatpush.msra.mxu0 %v198
    %v200 = vand.u32 %v109, 4294901760
    %v201 = vsub.f32 %v109, %v200
    %v202 = vand.u32 %v201, 4294901760
    %v203 = vsub.f32 %v201, %v202
    %v204 = vand.u32 %v203, 4294901760
    %205 = vmatpush.msra.mxu0 %v204
    %v206 = vand.u32 %v108, 4294901760
    %v207 = vsub.f32 %v108, %v206
    %v208 = vand.u32 %v207, 4294901760
    %v209 = vsub.f32 %v207, %v208
    %v210 = vand.u32 %v209, 4294901760
    %211 = vmatpush.msra.mxu0 %v210
    %v212 = vand.u32 %v107, 4294901760
    %v213 = vsub.f32 %v107, %v212
    %v214 = vand.u32 %v213, 4294901760
    %v215 = vsub.f32 %v213, %v214
    %v216 = vand.u32 %v215, 4294901760
    %217 = vmatpush.msra.mxu0 %v216
    %v218 = vand.u32 %v106, 4294901760
    %v219 = vsub.f32 %v106, %v218
    %v220 = vand.u32 %v219, 4294901760
    %v221 = vsub.f32 %v219, %v220
    %v222 = vand.u32 %v221, 4294901760
    %223 = vmatpush.msra.mxu0 %v222
    %v224 = vand.u32 %v105, 4294901760
    %v225 = vsub.f32 %v105, %v224
    %v226 = vand.u32 %v225, 4294901760
    %v227 = vsub.f32 %v225, %v226
    %v228 = vand.u32 %v227, 4294901760
    %229 = vmatpush.msra.mxu0 %v228
    %v230 = vand.u32 %v104, 4294901760
    %v231 = vsub.f32 %v104, %v230
    %v232 = vand.u32 %v231, 4294901760
    %v233 = vsub.f32 %v231, %v232
    %v234 = vand.u32 %v233, 4294901760
    %235 = vmatpush.msra.mxu0 %v234
    %v236 = vand.u32 %v103, 4294901760
    %v237 = vsub.f32 %v103, %v236
    %v238 = vand.u32 %v237, 4294901760
    %v239 = vsub.f32 %v237, %v238
    %v240 = vand.u32 %v239, 4294901760
    %241 = vmatpush.msra.mxu0 %v240
    %v242 = vand.u32 %v102, 4294901760
    %v243 = vsub.f32 %v102, %v242
    %v244 = vand.u32 %v243, 4294901760
    %v245 = vsub.f32 %v243, %v244
    %v246 = vand.u32 %v245, 4294901760
    %247 = vmatpush.msra.mxu0 %v246
    %v248 = vand.u32 %v101, 4294901760
    %v249 = vsub.f32 %v101, %v248
    %v250 = vand.u32 %v249, 4294901760
    %v251 = vsub.f32 %v249, %v250
    %v252 = vand.u32 %v251, 4294901760
    %253 = vmatpush.msra.mxu0 %v252
    %v254 = vand.u32 %v100, 4294901760
    %255 = vmatmul.f32.gmra.mxu0 %v254
    %v256 = vpop.f32.mrf.mxu0
    %v257 = vadd.f32 %v156, %v256
    %258 = vdwg.mxu0
    %v259 = vand.u32 %v116, 4294901760
    %v260 = vsub.f32 %v116, %v259
    %261 = vmatpush.msra.mxu0 %v260
    %v262 = vand.u32 %v115, 4294901760
    %v263 = vsub.f32 %v115, %v262
    %264 = vmatpush.msra.mxu0 %v263
    %v265 = vand.u32 %v114, 4294901760
    %v266 = vsub.f32 %v114, %v265
    %267 = vmatpush.msra.mxu0 %v266
    %v268 = vand.u32 %v113, 4294901760
    %v269 = vsub.f32 %v113, %v268
    %270 = vmatpush.msra.mxu0 %v269
    %v271 = vand.u32 %v112, 4294901760
    %v272 = vsub.f32 %v112, %v271
    %273 = vmatpush.msra.mxu0 %v272
    %v274 = vand.u32 %v111, 4294901760
    %v275 = vsub.f32 %v111, %v274
    %276 = vmatpush.msra.mxu0 %v275
    %v277 = vand.u32 %v110, 4294901760
    %v278 = vsub.f32 %v110, %v277
    %279 = vmatpush.msra.mxu0 %v278
    %v280 = vand.u32 %v109, 4294901760
    %v281 = vsub.f32 %v109, %v280
    %282 = vmatpush.msra.mxu0 %v281
    %v283 = vand.u32 %v108, 4294901760
    %v284 = vsub.f32 %v108, %v283
    %285 = vmatpush.msra.mxu0 %v284
    %v286 = vand.u32 %v107, 4294901760
    %v287 = vsub.f32 %v107, %v286
    %288 = vmatpush.msra.mxu0 %v287
    %v289 = vand.u32 %v106, 4294901760
    %v290 = vsub.f32 %v106, %v289
    %291 = vmatpush.msra.mxu0 %v290
    %v292 = vand.u32 %v105, 4294901760
    %v293 = vsub.f32 %v105, %v292
    %294 = vmatpush.msra.mxu0 %v293
    %v295 = vand.u32 %v104, 4294901760
    %v296 = vsub.f32 %v104, %v295
    %297 = vmatpush.msra.mxu0 %v296
    %v298 = vand.u32 %v103, 4294901760
    %v299 = vsub.f32 %v103, %v298
    %300 = vmatpush.msra.mxu0 %v299
    %v301 = vand.u32 %v102, 4294901760
    %v302 = vsub.f32 %v102, %v301
    %303 = vmatpush.msra.mxu0 %v302
    %v304 = vand.u32 %v101, 4294901760
    %v305 = vsub.f32 %v101, %v304
    %306 = vmatpush.msra.mxu0 %v305
    %v307 = vand.u32 %v100, 4294901760
    %v308 = vsub.f32 %v100, %v307
    %309 = vmatmul.f32.gmra.mxu0 %v308
    %v310 = vpop.f32.mrf.mxu0
    %v311 = vadd.f32 %v257, %v310
    %312 = vdwg.mxu0
    %v313 = vand.u32 %v116, 4294901760
    %314 = vmatpush.msra.mxu0 %v313
    %v315 = vand.u32 %v115, 4294901760
    %316 = vmatpush.msra.mxu0 %v315
    %v317 = vand.u32 %v114, 4294901760
    %318 = vmatpush.msra.mxu0 %v317
    %v319 = vand.u32 %v113, 4294901760
    %320 = vmatpush.msra.mxu0 %v319
    %v321 = vand.u32 %v112, 4294901760
    %322 = vmatpush.msra.mxu0 %v321
    %v323 = vand.u32 %v111, 4294901760
    %324 = vmatpush.msra.mxu0 %v323
    %v325 = vand.u32 %v110, 4294901760
    %326 = vmatpush.msra.mxu0 %v325
    %v327 = vand.u32 %v109, 4294901760
    %328 = vmatpush.msra.mxu0 %v327
    %v329 = vand.u32 %v108, 4294901760
    %330 = vmatpush.msra.mxu0 %v329
    %v331 = vand.u32 %v107, 4294901760
    %332 = vmatpush.msra.mxu0 %v331
    %v333 = vand.u32 %v106, 4294901760
    %334 = vmatpush.msra.mxu0 %v333
    %v335 = vand.u32 %v105, 4294901760
    %336 = vmatpush.msra.mxu0 %v335
    %v337 = vand.u32 %v104, 4294901760
    %338 = vmatpush.msra.mxu0 %v337
    %v339 = vand.u32 %v103, 4294901760
    %340 = vmatpush.msra.mxu0 %v339
    %v341 = vand.u32 %v102, 4294901760
    %342 = vmatpush.msra.mxu0 %v341
    %v343 = vand.u32 %v101, 4294901760
    %344 = vmatpush.msra.mxu0 %v343
    %v345 = vand.u32 %v100, 4294901760
    %v346 = vsub.f32 %v100, %v345
    %v347 = vand.u32 %v346, 4294901760
    %348 = vmatmul.f32.gmra.mxu0 %v347
    %v349 = vpop.f32.mrf.mxu0
    %v350 = vadd.f32 %v311, %v349
    %351 = vdwg.mxu0
    %v352 = vand.u32 %v116, 4294901760
    %v353 = vsub.f32 %v116, %v352
    %v354 = vand.u32 %v353, 4294901760
    %355 = vmatpush.msra.mxu0 %v354
    %v356 = vand.u32 %v115, 4294901760
    %v357 = vsub.f32 %v115, %v356
    %v358 = vand.u32 %v357, 4294901760
    %359 = vmatpush.msra.mxu0 %v358
    %v360 = vand.u32 %v114, 4294901760
    %v361 = vsub.f32 %v114, %v360
    %v362 = vand.u32 %v361, 4294901760
    %363 = vmatpush.msra.mxu0 %v362
    %v364 = vand.u32 %v113, 4294901760
    %v365 = vsub.f32 %v113, %v364
    %v366 = vand.u32 %v365, 4294901760
    %367 = vmatpush.msra.mxu0 %v366
    %v368 = vand.u32 %v112, 4294901760
    %v369 = vsub.f32 %v112, %v368
    %v370 = vand.u32 %v369, 4294901760
    %371 = vmatpush.msra.mxu0 %v370
    %v372 = vand.u32 %v111, 4294901760
    %v373 = vsub.f32 %v111, %v372
    %v374 = vand.u32 %v373, 4294901760
    %375 = vmatpush.msra.mxu0 %v374
    %v376 = vand.u32 %v110, 4294901760
    %v377 = vsub.f32 %v110, %v376
    %v378 = vand.u32 %v377, 4294901760
    %379 = vmatpush.msra.mxu0 %v378
    %v380 = vand.u32 %v109, 4294901760
    %v381 = vsub.f32 %v109, %v380
    %v382 = vand.u32 %v381, 4294901760
    %383 = vmatpush.msra.mxu0 %v382
    %v384 = vand.u32 %v108, 4294901760
    %v385 = vsub.f32 %v108, %v384
    %v386 = vand.u32 %v385, 4294901760
    %387 = vmatpush.msra.mxu0 %v386
    %v388 = vand.u32 %v107, 4294901760
    %v389 = vsub.f32 %v107, %v388
    %v390 = vand.u32 %v389, 4294901760
    %391 = vmatpush.msra.mxu0 %v390
    %v392 = vand.u32 %v106, 4294901760
    %v393 = vsub.f32 %v106, %v392
    %v394 = vand.u32 %v393, 4294901760
    %395 = vmatpush.msra.mxu0 %v394
    %v396 = vand.u32 %v105, 4294901760
    %v397 = vsub.f32 %v105, %v396
    %v398 = vand.u32 %v397, 4294901760
    %399 = vmatpush.msra.mxu0 %v398
    %v400 = vand.u32 %v104, 4294901760
    %v401 = vsub.f32 %v104, %v400
    %v402 = vand.u32 %v401, 4294901760
    %403 = vmatpush.msra.mxu0 %v402
    %v404 = vand.u32 %v103, 4294901760
    %v405 = vsub.f32 %v103, %v404
    %v406 = vand.u32 %v405, 4294901760
    %407 = vmatpush.msra.mxu0 %v406
    %v408 = vand.u32 %v102, 4294901760
    %v409 = vsub.f32 %v102, %v408
    %v410 = vand.u32 %v409, 4294901760
    %411 = vmatpush.msra.mxu0 %v410
    %v412 = vand.u32 %v101, 4294901760
    %v413 = vsub.f32 %v101, %v412
    %v414 = vand.u32 %v413, 4294901760
    %415 = vmatpush.msra.mxu0 %v414
    %v416 = vand.u32 %v100, 4294901760
    %417 = vmatmul.f32.gmra.mxu0 %v416
    %v418 = vpop.f32.mrf.mxu0
    %v419 = vadd.f32 %v350, %v418
    %420 = vdwg.mxu0
    %v421 = vand.u32 %v116, 4294901760
    %422 = vmatpush.msra.mxu0 %v421
    %v423 = vand.u32 %v115, 4294901760
    %424 = vmatpush.msra.mxu0 %v423
    %v425 = vand.u32 %v114, 4294901760
    %426 = vmatpush.msra.mxu0 %v425
    %v427 = vand.u32 %v113, 4294901760
    %428 = vmatpush.msra.mxu0 %v427
    %v429 = vand.u32 %v112, 4294901760
    %430 = vmatpush.msra.mxu0 %v429
    %v431 = vand.u32 %v111, 4294901760
    %432 = vmatpush.msra.mxu0 %v431
    %v433 = vand.u32 %v110, 4294901760
    %434 = vmatpush.msra.mxu0 %v433
    %v435 = vand.u32 %v109, 4294901760
    %436 = vmatpush.msra.mxu0 %v435
    %v437 = vand.u32 %v108, 4294901760
    %438 = vmatpush.msra.mxu0 %v437
    %v439 = vand.u32 %v107, 4294901760
    %440 = vmatpush.msra.mxu0 %v439
    %v441 = vand.u32 %v106, 4294901760
    %442 = vmatpush.msra.mxu0 %v441
    %v443 = vand.u32 %v105, 4294901760
    %444 = vmatpush.msra.mxu0 %v443
    %v445 = vand.u32 %v104, 4294901760
    %446 = vmatpush.msra.mxu0 %v445
    %v447 = vand.u32 %v103, 4294901760
    %448 = vmatpush.msra.mxu0 %v447
    %v449 = vand.u32 %v102, 4294901760
    %450 = vmatpush.msra.mxu0 %v449
    %v451 = vand.u32 %v101, 4294901760
    %452 = vmatpush.msra.mxu0 %v451
    %v453 = vand.u32 %v100, 4294901760
    %454 = vmatmul.f32.gmra.mxu0 %v453
    %v455 = vpop.f32.mrf.mxu0
    %v456 = vadd.f32 %v419, %v455
    %457 = vdwg.mxu0
    %v458 = vmul.f32 %v456, 0.125
    %459 = vst [vmem:[#allocation7] sm:$0xff] %v458
    // Predicated region
    $region18: #{tpu_custom_call.1} parent=1 // pred_check
      _
    $region19: #{tpu_custom_call.1} parent=1 // pred_check_branch
      %461 = sbr.rel (0) target = $region21
    $region20: #{tpu_custom_call.1} parent=1 // pred_region
      %463 = vsyncadd [#allocation4], 0
      %s465 = sshll.u32 [#allocation7], 4
      %s466 = int_to_ptr.vmem [resolvable:$true] %s465
      %s467 = sshll.u32 %s2, 4
      %s468 = int_to_ptr.hbm [resolvable:$true] %s467
      %470 = dma.vmem_to_hbm [thread:$0]  %s466, 128, %s468, [#allocation4]
    $region21: #{tpu_custom_call.1} parent=1 // pred_fallthru
      _
    // Predicated region
    $region22: #{tpu_custom_call.1} parent=1 // pred_check
      _
    $region23: #{tpu_custom_call.1} parent=1 // pred_check_branch
      %472 = sbr.rel (0) target = $region25
    $region24: #{tpu_custom_call.1} parent=1 // pred_region
      %474 = dma.done [#allocation4], 128
    $region25: #{tpu_custom_call.1} parent=1 // pred_fallthru
      _
    %475 = vsyncpa [#allocation3], 1
    %476 = vsyncpa [#allocation6], 1
    %477 = vsyncpa [#allocation4], 1

// kernel: tpu_custom_call.1
$region0: #{tpu_custom_call.1}
  #allocation0 [shape = 'u32[]', space=smem, size = 0x4, offset = 0x4, fixed_abs, tag = 'smem constant byte address 0x4 - core index']
  #allocation1 [shape = 'u32[72,128]{1,0:T(1,128)}', space=vmem, size = 0x9000, scoped, tag = 'internal scratch']
  %s0 = inlined_call_operand.hbm [shape: s32[8,8], index: 0, kind: input, shape index: {}]
  %s1 = inlined_call_operand.hbm [shape: f32[128,128], index: 1, kind: input, shape index: {}]
  %s2 = inlined_call_operand.hbm [shape: f32[8,128], index: 2, kind: output, shape index: {}]
  %s3 = sld [smem:[#allocation0]]
  $region26: #{tpu_custom_call.1} parent=0
    _
  %s5 = ssub.s32 1, %s3
  %s6 = scalar_select 0, %s5, %s3
  $region1: #{tpu_custom_call.1} parent=0
    #allocation2 [shape = 'u8[4096]{0}', space=vmem, size = 0x1000, scoped, tag = 'input window, operand 0, single buffered']
    #allocation3 [shape = 's32[1]{0}', space=sflag, size = 0x4, scoped, tag = 'scoped memory for tpu_custom_call.1']
    #allocation4 [shape = 's32[1]{0}', space=sflag, size = 0x4, scoped, tag = 'scoped memory for tpu_custom_call.1']
    #allocation5 [shape = 'u8[65536]{0}', space=vmem, size = 0x10000, scoped, tag = 'input window, operand 1, single buffered']
    #allocation6 [shape = 's32[1]{0}', space=sflag, size = 0x4, scoped, tag = 'scoped memory for tpu_custom_call.1']
    #allocation7 [shape = 'u8[4096]{0}', space=vmem, size = 0x1000, scoped, tag = 'output window, operand 0, single buffered']
    %7 = vsyncpa [#allocation3], 0
    %8 = vsyncpa [#allocation6], 0
    %9 = vsyncpa [#allocation4], 0
    // Predicated region
    $region2: #{tpu_custom_call.1} parent=1 // pred_check
      _
    $region3: #{tpu_custom_call.1} parent=1 // pred_check_branch
      %11 = sbr.rel (0) target = $region5
    $region4: #{tpu_custom_call.1} parent=1 // pred_region
      %13 = vsyncadd [#allocation3], 0
      %s15 = sshll.u32 %s0, 4
      %s16 = int_to_ptr.hbm [resolvable:$true] %s15
      %s17 = sshll.u32 [#allocation2], 4
      %s18 = int_to_ptr.vmem [resolvable:$true] %s17
      %20 = dma.hbm_to_vmem [thread:$0]  %s16, 128, %s18, [#allocation3]
    $region5: #{tpu_custom_call.1} parent=1 // pred_fallthru
      _
    // Predicated region
    $region6: #{tpu_custom_call.1} parent=1 // pred_check
      _
    $region7: #{tpu_custom_call.1} parent=1 // pred_check_branch
      %22 = sbr.rel (0) target = $region9
    $region8: #{tpu_custom_call.1} parent=1 // pred_region
      %24 = vsyncadd [#allocation6], 0
      %s25 = sshll.u32 %s1, 4
      %s26 = int_to_ptr.hbm [resolvable:$true] %s25
      %s27 = sshll.u32 [#allocation5], 4
      %s28 = int_to_ptr.vmem [resolvable:$true] %s27
      %33 = dma.hbm_to_vmem [thread:$0]  %s26, 2048, %s28, [#allocation6], 128, 128, 8
    $region9: #{tpu_custom_call.1} parent=1 // pred_fallthru
      _
    // Predicated region
    $region10: #{tpu_custom_call.1} parent=1 // pred_check
      _
    $region11: #{tpu_custom_call.1} parent=1 // pred_check_branch
      %35 = sbr.rel (0) target = $region13
    $region12: #{tpu_custom_call.1} parent=1 // pred_region
      %37 = dma.done [#allocation3], 128
    $region13: #{tpu_custom_call.1} parent=1 // pred_fallthru
      _
    // Predicated region
    $region14: #{tpu_custom_call.1} parent=1 // pred_check
      _
    $region15: #{tpu_custom_call.1} parent=1 // pred_check_branch
      %39 = sbr.rel (0) target = $region17
    $region16: #{tpu_custom_call.1} parent=1 // pred_region
      %41 = dma.done [#allocation6], 2048
    $region17: #{tpu_custom_call.1} parent=1 // pred_fallthru
      _
    %v42 = vld [vmem:[#allocation2] sm:$0xff]
    %v43 = vlaneseq
    %v44 = vand.u32 %v43, 127
    %45 = vset.pattern.permute.xlu0 0
    %46 = vperm.xlu0 %45, %v42
    %v47 = vpop.permute.xlu0 %46
    %vm48 = vcmp.eq.s32.totalorder %v47, %v44
    %v49 = vsel %vm48, 1, 0
    %v50 = vcvt.s32.f32 %v49
    %v51 = vadd.f32 %v50, 0.0
    %52 = vset.pattern.permute.xlu0 1
    %53 = vperm.xlu0 %52, %v42
    %v54 = vpop.permute.xlu0 %53
    %vm55 = vcmp.eq.s32.totalorder %v54, %v44
    %v56 = vsel %vm55, 1, 0
    %v57 = vcvt.s32.f32 %v56
    %v58 = vadd.f32 %v51, %v57
    %59 = vset.pattern.permute.xlu0 2
    %60 = vperm.xlu0 %59, %v42
    %v61 = vpop.permute.xlu0 %60
    %vm62 = vcmp.eq.s32.totalorder %v61, %v44
    %v63 = vsel %vm62, 1, 0
    %v64 = vcvt.s32.f32 %v63
    %v65 = vadd.f32 %v58, %v64
    %66 = vset.pattern.permute.xlu0 3
    %67 = vperm.xlu0 %66, %v42
    %v68 = vpop.permute.xlu0 %67
    %vm69 = vcmp.eq.s32.totalorder %v68, %v44
    %v70 = vsel %vm69, 1, 0
    %v71 = vcvt.s32.f32 %v70
    %v72 = vadd.f32 %v65, %v71
    %73 = vset.pattern.permute.xlu0 4
    %74 = vperm.xlu0 %73, %v42
    %v75 = vpop.permute.xlu0 %74
    %vm76 = vcmp.eq.s32.totalorder %v75, %v44
    %v77 = vsel %vm76, 1, 0
    %v78 = vcvt.s32.f32 %v77
    %v79 = vadd.f32 %v72, %v78
    %80 = vset.pattern.permute.xlu0 5
    %81 = vperm.xlu0 %80, %v42
    %v82 = vpop.permute.xlu0 %81
    %vm83 = vcmp.eq.s32.totalorder %v82, %v44
    %v84 = vsel %vm83, 1, 0
    %v85 = vcvt.s32.f32 %v84
    %v86 = vadd.f32 %v79, %v85
    %87 = vset.pattern.permute.xlu0 6
    %88 = vperm.xlu0 %87, %v42
    %v89 = vpop.permute.xlu0 %88
    %vm90 = vcmp.eq.s32.totalorder %v89, %v44
    %v91 = vsel %vm90, 1, 0
    %v92 = vcvt.s32.f32 %v91
    %v93 = vadd.f32 %v86, %v92
    %94 = vset.pattern.permute.xlu0 7
    %95 = vperm.xlu0 %94, %v42
    %v96 = vpop.permute.xlu0 %95
    %vm97 = vcmp.eq.s32.totalorder %v96, %v44
    %v98 = vsel %vm97, 1, 0
    %v99 = vcvt.s32.f32 %v98
    %v100 = vadd.f32 %v93, %v99
    %v101 = vld [vmem:[#allocation5] sm:$0xff]
    %v102 = vld [vmem:[#allocation5 + $0x8] sm:$0xff]
    %v103 = vld [vmem:[#allocation5 + $0x10] sm:$0xff]
    %v104 = vld [vmem:[#allocation5 + $0x18] sm:$0xff]
    %v105 = vld [vmem:[#allocation5 + $0x20] sm:$0xff]
    %v106 = vld [vmem:[#allocation5 + $0x28] sm:$0xff]
    %v107 = vld [vmem:[#allocation5 + $0x30] sm:$0xff]
    %v108 = vld [vmem:[#allocation5 + $0x38] sm:$0xff]
    %v109 = vld [vmem:[#allocation5 + $0x40] sm:$0xff]
    %v110 = vld [vmem:[#allocation5 + $0x48] sm:$0xff]
    %v111 = vld [vmem:[#allocation5 + $0x50] sm:$0xff]
    %v112 = vld [vmem:[#allocation5 + $0x58] sm:$0xff]
    %v113 = vld [vmem:[#allocation5 + $0x60] sm:$0xff]
    %v114 = vld [vmem:[#allocation5 + $0x68] sm:$0xff]
    %v115 = vld [vmem:[#allocation5 + $0x70] sm:$0xff]
    %v116 = vld [vmem:[#allocation5 + $0x78] sm:$0xff]
    %v117 = vand.u32 %v116, 4294901760
    %118 = vmatpush.msra.mxu0 %v117
    %v119 = vand.u32 %v115, 4294901760
    %120 = vmatpush.msra.mxu0 %v119
    %v121 = vand.u32 %v114, 4294901760
    %122 = vmatpush.msra.mxu0 %v121
    %v123 = vand.u32 %v113, 4294901760
    %124 = vmatpush.msra.mxu0 %v123
    %v125 = vand.u32 %v112, 4294901760
    %126 = vmatpush.msra.mxu0 %v125
    %v127 = vand.u32 %v111, 4294901760
    %128 = vmatpush.msra.mxu0 %v127
    %v129 = vand.u32 %v110, 4294901760
    %130 = vmatpush.msra.mxu0 %v129
    %v131 = vand.u32 %v109, 4294901760
    %132 = vmatpush.msra.mxu0 %v131
    %v133 = vand.u32 %v108, 4294901760
    %134 = vmatpush.msra.mxu0 %v133
    %v135 = vand.u32 %v107, 4294901760
    %136 = vmatpush.msra.mxu0 %v135
    %v137 = vand.u32 %v106, 4294901760
    %138 = vmatpush.msra.mxu0 %v137
    %v139 = vand.u32 %v105, 4294901760
    %140 = vmatpush.msra.mxu0 %v139
    %v141 = vand.u32 %v104, 4294901760
    %142 = vmatpush.msra.mxu0 %v141
    %v143 = vand.u32 %v103, 4294901760
    %144 = vmatpush.msra.mxu0 %v143
    %v145 = vand.u32 %v102, 4294901760
    %146 = vmatpush.msra.mxu0 %v145
    %v147 = vand.u32 %v101, 4294901760
    %148 = vmatpush.msra.mxu0 %v147
    %v149 = vand.u32 %v100, 4294901760
    %v150 = vsub.f32 %v100, %v149
    %v151 = vand.u32 %v150, 4294901760
    %v152 = vsub.f32 %v150, %v151
    %v153 = vand.u32 %v152, 4294901760
    %154 = vmatmul.f32.gmra.mxu0 %v153
    %v155 = vpop.f32.mrf.mxu0
    %v156 = vadd.f32 0.0, %v155
    %157 = vdwg.mxu0
    %v158 = vand.u32 %v116, 4294901760
    %v159 = vsub.f32 %v116, %v158
    %v160 = vand.u32 %v159, 4294901760
    %v161 = vsub.f32 %v159, %v160
    %v162 = vand.u32 %v161, 4294901760
    %163 = vmatpush.msra.mxu0 %v162
    %v164 = vand.u32 %v115, 4294901760
    %v165 = vsub.f32 %v115, %v164
    %v166 = vand.u32 %v165, 4294901760
    %v167 = vsub.f32 %v165, %v166
    %v168 = vand.u32 %v167, 4294901760
    %169 = vmatpush.msra.mxu0 %v168
    %v170 = vand.u32 %v114, 4294901760
    %v171 = vsub.f32 %v114, %v170
    %v172 = vand.u32 %v171, 4294901760
    %v173 = vsub.f32 %v171, %v172
    %v174 = vand.u32 %v173, 4294901760
    %175 = vmatpush.msra.mxu0 %v174
    %v176 = vand.u32 %v113, 4294901760
    %v177 = vsub.f32 %v113, %v176
    %v178 = vand.u32 %v177, 4294901760
    %v179 = vsub.f32 %v177, %v178
    %v180 = vand.u32 %v179, 4294901760
    %181 = vmatpush.msra.mxu0 %v180
    %v182 = vand.u32 %v112, 4294901760
    %v183 = vsub.f32 %v112, %v182
    %v184 = vand.u32 %v183, 4294901760
    %v185 = vsub.f32 %v183, %v184
    %v186 = vand.u32 %v185, 4294901760
    %187 = vmatpush.msra.mxu0 %v186
    %v188 = vand.u32 %v111, 4294901760
    %v189 = vsub.f32 %v111, %v188
    %v190 = vand.u32 %v189, 4294901760
    %v191 = vsub.f32 %v189, %v190
    %v192 = vand.u32 %v191, 4294901760
    %193 = vmatpush.msra.mxu0 %v192
    %v194 = vand.u32 %v110, 4294901760
    %v195 = vsub.f32 %v110, %v194
    %v196 = vand.u32 %v195, 4294901760
    %v197 = vsub.f32 %v195, %v196
    %v198 = vand.u32 %v197, 4294901760
    %199 = vmatpush.msra.mxu0 %v198
    %v200 = vand.u32 %v109, 4294901760
    %v201 = vsub.f32 %v109, %v200
    %v202 = vand.u32 %v201, 4294901760
    %v203 = vsub.f32 %v201, %v202
    %v204 = vand.u32 %v203, 4294901760
    %205 = vmatpush.msra.mxu0 %v204
    %v206 = vand.u32 %v108, 4294901760
    %v207 = vsub.f32 %v108, %v206
    %v208 = vand.u32 %v207, 4294901760
    %v209 = vsub.f32 %v207, %v208
    %v210 = vand.u32 %v209, 4294901760
    %211 = vmatpush.msra.mxu0 %v210
    %v212 = vand.u32 %v107, 4294901760
    %v213 = vsub.f32 %v107, %v212
    %v214 = vand.u32 %v213, 4294901760
    %v215 = vsub.f32 %v213, %v214
    %v216 = vand.u32 %v215, 4294901760
    %217 = vmatpush.msra.mxu0 %v216
    %v218 = vand.u32 %v106, 4294901760
    %v219 = vsub.f32 %v106, %v218
    %v220 = vand.u32 %v219, 4294901760
    %v221 = vsub.f32 %v219, %v220
    %v222 = vand.u32 %v221, 4294901760
    %223 = vmatpush.msra.mxu0 %v222
    %v224 = vand.u32 %v105, 4294901760
    %v225 = vsub.f32 %v105, %v224
    %v226 = vand.u32 %v225, 4294901760
    %v227 = vsub.f32 %v225, %v226
    %v228 = vand.u32 %v227, 4294901760
    %229 = vmatpush.msra.mxu0 %v228
    %v230 = vand.u32 %v104, 4294901760
    %v231 = vsub.f32 %v104, %v230
    %v232 = vand.u32 %v231, 4294901760
    %v233 = vsub.f32 %v231, %v232
    %v234 = vand.u32 %v233, 4294901760
    %235 = vmatpush.msra.mxu0 %v234
    %v236 = vand.u32 %v103, 4294901760
    %v237 = vsub.f32 %v103, %v236
    %v238 = vand.u32 %v237, 4294901760
    %v239 = vsub.f32 %v237, %v238
    %v240 = vand.u32 %v239, 4294901760
    %241 = vmatpush.msra.mxu0 %v240
    %v242 = vand.u32 %v102, 4294901760
    %v243 = vsub.f32 %v102, %v242
    %v244 = vand.u32 %v243, 4294901760
    %v245 = vsub.f32 %v243, %v244
    %v246 = vand.u32 %v245, 4294901760
    %247 = vmatpush.msra.mxu0 %v246
    %v248 = vand.u32 %v101, 4294901760
    %v249 = vsub.f32 %v101, %v248
    %v250 = vand.u32 %v249, 4294901760
    %v251 = vsub.f32 %v249, %v250
    %v252 = vand.u32 %v251, 4294901760
    %253 = vmatpush.msra.mxu0 %v252
    %v254 = vand.u32 %v100, 4294901760
    %255 = vmatmul.f32.gmra.mxu0 %v254
    %v256 = vpop.f32.mrf.mxu0
    %v257 = vadd.f32 %v156, %v256
    %258 = vdwg.mxu0
    %v259 = vand.u32 %v116, 4294901760
    %v260 = vsub.f32 %v116, %v259
    %261 = vmatpush.msra.mxu0 %v260
    %v262 = vand.u32 %v115, 4294901760
    %v263 = vsub.f32 %v115, %v262
    %264 = vmatpush.msra.mxu0 %v263
    %v265 = vand.u32 %v114, 4294901760
    %v266 = vsub.f32 %v114, %v265
    %267 = vmatpush.msra.mxu0 %v266
    %v268 = vand.u32 %v113, 4294901760
    %v269 = vsub.f32 %v113, %v268
    %270 = vmatpush.msra.mxu0 %v269
    %v271 = vand.u32 %v112, 4294901760
    %v272 = vsub.f32 %v112, %v271
    %273 = vmatpush.msra.mxu0 %v272
    %v274 = vand.u32 %v111, 4294901760
    %v275 = vsub.f32 %v111, %v274
    %276 = vmatpush.msra.mxu0 %v275
    %v277 = vand.u32 %v110, 4294901760
    %v278 = vsub.f32 %v110, %v277
    %279 = vmatpush.msra.mxu0 %v278
    %v280 = vand.u32 %v109, 4294901760
    %v281 = vsub.f32 %v109, %v280
    %282 = vmatpush.msra.mxu0 %v281
    %v283 = vand.u32 %v108, 4294901760
    %v284 = vsub.f32 %v108, %v283
    %285 = vmatpush.msra.mxu0 %v284
    %v286 = vand.u32 %v107, 4294901760
    %v287 = vsub.f32 %v107, %v286
    %288 = vmatpush.msra.mxu0 %v287
    %v289 = vand.u32 %v106, 4294901760
    %v290 = vsub.f32 %v106, %v289
    %291 = vmatpush.msra.mxu0 %v290
    %v292 = vand.u32 %v105, 4294901760
    %v293 = vsub.f32 %v105, %v292
    %294 = vmatpush.msra.mxu0 %v293
    %v295 = vand.u32 %v104, 4294901760
    %v296 = vsub.f32 %v104, %v295
    %297 = vmatpush.msra.mxu0 %v296
    %v298 = vand.u32 %v103, 4294901760
    %v299 = vsub.f32 %v103, %v298
    %300 = vmatpush.msra.mxu0 %v299
    %v301 = vand.u32 %v102, 4294901760
    %v302 = vsub.f32 %v102, %v301
    %303 = vmatpush.msra.mxu0 %v302
    %v304 = vand.u32 %v101, 4294901760
    %v305 = vsub.f32 %v101, %v304
    %306 = vmatpush.msra.mxu0 %v305
    %v307 = vand.u32 %v100, 4294901760
    %v308 = vsub.f32 %v100, %v307
    %309 = vmatmul.f32.gmra.mxu0 %v308
    %v310 = vpop.f32.mrf.mxu0
    %v311 = vadd.f32 %v257, %v310
    %312 = vdwg.mxu0
    %v313 = vand.u32 %v116, 4294901760
    %314 = vmatpush.msra.mxu0 %v313
    %v315 = vand.u32 %v115, 4294901760
    %316 = vmatpush.msra.mxu0 %v315
    %v317 = vand.u32 %v114, 4294901760
    %318 = vmatpush.msra.mxu0 %v317
    %v319 = vand.u32 %v113, 4294901760
    %320 = vmatpush.msra.mxu0 %v319
    %v321 = vand.u32 %v112, 4294901760
    %322 = vmatpush.msra.mxu0 %v321
    %v323 = vand.u32 %v111, 4294901760
    %324 = vmatpush.msra.mxu0 %v323
    %v325 = vand.u32 %v110, 4294901760
    %326 = vmatpush.msra.mxu0 %v325
    %v327 = vand.u32 %v109, 4294901760
    %328 = vmatpush.msra.mxu0 %v327
    %v329 = vand.u32 %v108, 4294901760
    %330 = vmatpush.msra.mxu0 %v329
    %v331 = vand.u32 %v107, 4294901760
    %332 = vmatpush.msra.mxu0 %v331
    %v333 = vand.u32 %v106, 4294901760
    %334 = vmatpush.msra.mxu0 %v333
    %v335 = vand.u32 %v105, 4294901760
    %336 = vmatpush.msra.mxu0 %v335
    %v337 = vand.u32 %v104, 4294901760
    %338 = vmatpush.msra.mxu0 %v337
    %v339 = vand.u32 %v103, 4294901760
    %340 = vmatpush.msra.mxu0 %v339
    %v341 = vand.u32 %v102, 4294901760
    %342 = vmatpush.msra.mxu0 %v341
    %v343 = vand.u32 %v101, 4294901760
    %344 = vmatpush.msra.mxu0 %v343
    %v345 = vand.u32 %v100, 4294901760
    %v346 = vsub.f32 %v100, %v345
    %v347 = vand.u32 %v346, 4294901760
    %348 = vmatmul.f32.gmra.mxu0 %v347
    %v349 = vpop.f32.mrf.mxu0
    %v350 = vadd.f32 %v311, %v349
    %351 = vdwg.mxu0
    %v352 = vand.u32 %v116, 4294901760
    %v353 = vsub.f32 %v116, %v352
    %v354 = vand.u32 %v353, 4294901760
    %355 = vmatpush.msra.mxu0 %v354
    %v356 = vand.u32 %v115, 4294901760
    %v357 = vsub.f32 %v115, %v356
    %v358 = vand.u32 %v357, 4294901760
    %359 = vmatpush.msra.mxu0 %v358
    %v360 = vand.u32 %v114, 4294901760
    %v361 = vsub.f32 %v114, %v360
    %v362 = vand.u32 %v361, 4294901760
    %363 = vmatpush.msra.mxu0 %v362
    %v364 = vand.u32 %v113, 4294901760
    %v365 = vsub.f32 %v113, %v364
    %v366 = vand.u32 %v365, 4294901760
    %367 = vmatpush.msra.mxu0 %v366
    %v368 = vand.u32 %v112, 4294901760
    %v369 = vsub.f32 %v112, %v368
    %v370 = vand.u32 %v369, 4294901760
    %371 = vmatpush.msra.mxu0 %v370
    %v372 = vand.u32 %v111, 4294901760
    %v373 = vsub.f32 %v111, %v372
    %v374 = vand.u32 %v373, 4294901760
    %375 = vmatpush.msra.mxu0 %v374
    %v376 = vand.u32 %v110, 4294901760
    %v377 = vsub.f32 %v110, %v376
    %v378 = vand.u32 %v377, 4294901760
    %379 = vmatpush.msra.mxu0 %v378
    %v380 = vand.u32 %v109, 4294901760
    %v381 = vsub.f32 %v109, %v380
    %v382 = vand.u32 %v381, 4294901760
    %383 = vmatpush.msra.mxu0 %v382
    %v384 = vand.u32 %v108, 4294901760
    %v385 = vsub.f32 %v108, %v384
    %v386 = vand.u32 %v385, 4294901760
    %387 = vmatpush.msra.mxu0 %v386
    %v388 = vand.u32 %v107, 4294901760
    %v389 = vsub.f32 %v107, %v388
    %v390 = vand.u32 %v389, 4294901760
    %391 = vmatpush.msra.mxu0 %v390
    %v392 = vand.u32 %v106, 4294901760
    %v393 = vsub.f32 %v106, %v392
    %v394 = vand.u32 %v393, 4294901760
    %395 = vmatpush.msra.mxu0 %v394
    %v396 = vand.u32 %v105, 4294901760
    %v397 = vsub.f32 %v105, %v396
    %v398 = vand.u32 %v397, 4294901760
    %399 = vmatpush.msra.mxu0 %v398
    %v400 = vand.u32 %v104, 4294901760
    %v401 = vsub.f32 %v104, %v400
    %v402 = vand.u32 %v401, 4294901760
    %403 = vmatpush.msra.mxu0 %v402
    %v404 = vand.u32 %v103, 4294901760
    %v405 = vsub.f32 %v103, %v404
    %v406 = vand.u32 %v405, 4294901760
    %407 = vmatpush.msra.mxu0 %v406
    %v408 = vand.u32 %v102, 4294901760
    %v409 = vsub.f32 %v102, %v408
    %v410 = vand.u32 %v409, 4294901760
    %411 = vmatpush.msra.mxu0 %v410
    %v412 = vand.u32 %v101, 4294901760
    %v413 = vsub.f32 %v101, %v412
    %v414 = vand.u32 %v413, 4294901760
    %415 = vmatpush.msra.mxu0 %v414
    %v416 = vand.u32 %v100, 4294901760
    %417 = vmatmul.f32.gmra.mxu0 %v416
    %v418 = vpop.f32.mrf.mxu0
    %v419 = vadd.f32 %v350, %v418
    %420 = vdwg.mxu0
    %v421 = vand.u32 %v116, 4294901760
    %422 = vmatpush.msra.mxu0 %v421
    %v423 = vand.u32 %v115, 4294901760
    %424 = vmatpush.msra.mxu0 %v423
    %v425 = vand.u32 %v114, 4294901760
    %426 = vmatpush.msra.mxu0 %v425
    %v427 = vand.u32 %v113, 4294901760
    %428 = vmatpush.msra.mxu0 %v427
    %v429 = vand.u32 %v112, 4294901760
    %430 = vmatpush.msra.mxu0 %v429
    %v431 = vand.u32 %v111, 4294901760
    %432 = vmatpush.msra.mxu0 %v431
    %v433 = vand.u32 %v110, 4294901760
    %434 = vmatpush.msra.mxu0 %v433
    %v435 = vand.u32 %v109, 4294901760
    %436 = vmatpush.msra.mxu0 %v435
    %v437 = vand.u32 %v108, 4294901760
    %438 = vmatpush.msra.mxu0 %v437
    %v439 = vand.u32 %v107, 4294901760
    %440 = vmatpush.msra.mxu0 %v439
    %v441 = vand.u32 %v106, 4294901760
    %442 = vmatpush.msra.mxu0 %v441
    %v443 = vand.u32 %v105, 4294901760
    %444 = vmatpush.msra.mxu0 %v443
    %v445 = vand.u32 %v104, 4294901760
    %446 = vmatpush.msra.mxu0 %v445
    %v447 = vand.u32 %v103, 4294901760
    %448 = vmatpush.msra.mxu0 %v447
    %v449 = vand.u32 %v102, 4294901760
    %450 = vmatpush.msra.mxu0 %v449
    %v451 = vand.u32 %v101, 4294901760
    %452 = vmatpush.msra.mxu0 %v451
    %v453 = vand.u32 %v100, 4294901760
    %454 = vmatmul.f32.gmra.mxu0 %v453
    %v455 = vpop.f32.mrf.mxu0
    %v456 = vadd.f32 %v419, %v455
    %457 = vdwg.mxu0
    %v458 = vmul.f32 %v456, 0.125
    %459 = vst [vmem:[#allocation7] sm:$0xff] %v458
    // Predicated region
    $region18: #{tpu_custom_call.1} parent=1 // pred_check
      _
    $region19: #{tpu_custom_call.1} parent=1 // pred_check_branch
      %461 = sbr.rel (0) target = $region21
    $region20: #{tpu_custom_call.1} parent=1 // pred_region
      %463 = vsyncadd [#allocation4], 0
      %s465 = sshll.u32 [#allocation7], 4
      %s466 = int_to_ptr.vmem [resolvable:$true] %s465
      %s467 = sshll.u32 %s2, 4
      %s468 = int_to_ptr.hbm [resolvable:$true] %s467
      %470 = dma.vmem_to_hbm [thread:$0]  %s466, 128, %s468, [#allocation4]
    $region21: #{tpu_custom_call.1} parent=1 // pred_fallthru
      _
    // Predicated region
    $region22: #{tpu_custom_call.1} parent=1 // pred_check
      _
    $region23: #{tpu_custom_call.1} parent=1 // pred_check_branch
      %472 = sbr.rel (0) target = $region25
    $region24: #{tpu_custom_call.1} parent=1 // pred_region
      %474 = dma.done [#allocation4], 128
    $region25: #{tpu_custom_call.1} parent=1 // pred_fallthru
      _
    %475 = vsyncpa [#allocation3], 1
    %476 = vsyncpa [#allocation6], 1
    %477 = vsyncpa [#allocation4], 1

</llo_original>
